<compile_context>
chip_gen: v5e
topology: v5e:2x2
jax: 0.10.0
libtpu: 0.0.40
codegen_flags: <defaults>
</compile_context>

<pallas_src>
import functools

import jax
import jax.numpy as jnp
from jax.experimental import pallas as pl
from jax.experimental.pallas import tpu as pltpu


def _decoder_kernel(x_ref, w_ref, b_ref, o_ref):
    """Single-shot: o = sigmoid(x @ W_T + b), whole arrays resident in VMEM."""
    z = jnp.dot(x_ref[...], w_ref[...], preferred_element_type=jnp.float32)
    z = z + b_ref[...].astype(jnp.float32)          # bias broadcast over rows
    # jax.nn.sigmoid -> exp + reciprocal on the EUP slot, numerically robust.
    o_ref[...] = jax.nn.sigmoid(z).astype(o_ref.dtype)


@jax.jit
def decoder_forward(x, w_t, b):
    """x: (M, K) float32, w_t: (K, N) float32 (already W.T), b: (N,) float32.

    Returns sigmoid(x @ w_t + b) as (M, N) float32.
    """
    M, K = x.shape
    K2, N = w_t.shape
    assert K == K2, "x / weight inner-dim mismatch"

    # Whole-array residency: make sure we comfortably fit the scoped VMEM
    # default on every generation (v7x: 32 MiB scoped of 64 MiB physical).
    # bf16 inputs + f32 output, with slack for the f32 matmul result.
    approx_vmem = 2 * (M * K + K * N) + 4 * (2 * M * N)
    assert approx_vmem < 16 * 1024 * 1024, (
        "Decoder too large for single-block kernel; re-introduce tiling."
    )

    # bf16 inputs for the MXU / halved HBM bytes; f32 accumulate + epilogue.
    x_bf = x.astype(jnp.bfloat16)
    w_bf = w_t.astype(jnp.bfloat16)
    b2 = b.reshape(1, N).astype(jnp.float32)        # 2-D, lane-major bias

    vmem_spec = pl.BlockSpec(memory_space=pltpu.MemorySpace.VMEM)

    cost = pl.CostEstimate(
        flops=2 * M * K * N,
        transcendentals=M * N,                      # one exp per output elem
        bytes_accessed=x_bf.size * 2 + w_bf.size * 2 + b2.size * 4 + M * N * 4,
    )

    return pl.pallas_call(
        _decoder_kernel,
        out_shape=jax.ShapeDtypeStruct((M, N), jnp.float32),
        in_specs=[vmem_spec, vmem_spec, vmem_spec],
        out_specs=vmem_spec,
        cost_estimate=cost,
    )(x_bf, w_bf, b2)


if __name__ == "__main__":
    # Shapes consistent with the module defaults: indim=512, outdim=256.
    batch, indim, outdim = 8, 512, 256

    key = jax.random.PRNGKey(0)
    kx, kw, kb = jax.random.split(key, 3)

    x = jax.random.normal(kx, (batch, indim), dtype=jnp.float32)
    # PyTorch nn.Linear stores weight as (outdim, indim).
    w = jax.random.normal(kw, (outdim, indim), dtype=jnp.float32) * 0.02
    b = jax.random.normal(kb, (outdim,), dtype=jnp.float32) * 0.02

    out = decoder_forward(x, w.T, b)
    out = jax.block_until_ready(out)

    # Correctness check vs pure-JAX f32 reference (bf16 matmul inputs => loose
    # absolute tolerance; sigmoid bounds output error well below this).
    ref = jax.nn.sigmoid(x @ w.T + b)
    assert out.shape == ref.shape
    assert jnp.allclose(out, ref, atol=2e-2, rtol=0.0), "mismatch vs reference"

    print("KERNEL_OK")
</pallas_src>

<mosaic_0001>
module attributes {stable_mosaic.version = 11 : i64} {
  func.func @_decoder_kernel(%arg0: memref<8x512xbf16, #tpu.memory_space<vmem>>, %arg1: memref<512x256xbf16, #tpu.memory_space<vmem>>, %arg2: memref<1x256xf32, #tpu.memory_space<vmem>>, %arg3: memref<8x256xf32, #tpu.memory_space<vmem>>) attributes {dimension_semantics = [], scalar_prefetch = 0 : i64, scratch_operands = 0 : i64, tpu.core_type = #tpu.core_type<tc>} {
    %c0 = arith.constant 0 : index
    %c0_0 = arith.constant 0 : index
    %0 = vector.load %arg0[%c0, %c0_0] : memref<8x512xbf16, #tpu.memory_space<vmem>>, vector<8x512xbf16>
    %c0_1 = arith.constant 0 : index
    %c0_2 = arith.constant 0 : index
    %1 = vector.load %arg1[%c0_1, %c0_2] : memref<512x256xbf16, #tpu.memory_space<vmem>>, vector<512x256xbf16>
    %cst = arith.constant dense<0.000000e+00> : vector<8x256xf32>
    %2 = tpu.matmul %0, %1, %cst {dimension_numbers = #tpu.dot_dimension_numbers<[1], [0], [0], [1], [0, 0, 1, 1], [], []>} : vector<8x512xbf16>, vector<512x256xbf16>, vector<8x256xf32> -> vector<8x256xf32>
    %c0_3 = arith.constant 0 : index
    %c0_4 = arith.constant 0 : index
    %3 = vector.load %arg2[%c0_3, %c0_4] : memref<1x256xf32, #tpu.memory_space<vmem>>, vector<1x256xf32>
    %4 = vector.broadcast %3 : vector<1x256xf32> to vector<8x256xf32>
    %5 = arith.addf %2, %4 : vector<8x256xf32>
    %6 = arith.negf %5 : vector<8x256xf32>
    %7 = math.exp %6 : vector<8x256xf32>
    %cst_5 = arith.constant 1.000000e+00 : f32
    %8 = vector.broadcast %cst_5 : f32 to vector<8x256xf32>
    %9 = arith.addf %8, %7 : vector<8x256xf32>
    %10 = arith.divf %8, %9 : vector<8x256xf32>
    %c0_6 = arith.constant 0 : index
    %c0_7 = arith.constant 0 : index
    %11 = vector.load %arg3[%c0_6, %c0_7] : memref<8x256xf32, #tpu.memory_space<vmem>>, vector<8x256xf32>
    tpu.vector_store %arg3[%c0_6, %c0_7], %10 {strides = array<i32>} : memref<8x256xf32, #tpu.memory_space<vmem>>, vector<8x256xf32>,
    return
  }
}

</mosaic_0001>

<llo_original>
// kernel: decoder_forward.1
$region0: #{decoder_forward.1}
  #allocation0 [shape = 'u32[]', space=smem, size = 0x4, offset = 0x4, fixed_abs, tag = 'smem constant byte address 0x4 - core index']
  #allocation1 [shape = 'u32[72,128]{1,0:T(1,128)}', space=vmem, size = 0x9000, scoped, tag = 'internal scratch']
  %s0 = inlined_call_operand.vmem [shape: bf16[8,512], index: 0, kind: input, shape index: {}]
  %s1 = inlined_call_operand.vmem [shape: bf16[512,256], index: 1, kind: input, shape index: {}]
  %s2 = inlined_call_operand.vmem [shape: f32[1,256], index: 2, kind: input, shape index: {}]
  %s3 = inlined_call_operand.hbm [shape: f32[8,256], index: 3, kind: output, shape index: {}]
  %s4 = sld [smem:[#allocation0]]
  $region22: #{decoder_forward.1} parent=0
    _
  %s6 = ssub.s32 1, %s4
  %s7 = scalar_select 0, %s6, %s4
  $region1: #{decoder_forward.1} parent=0
    #allocation2 [shape = 'u8[8192]{0}', space=vmem, size = 0x2000, scoped, tag = 'output window, operand 0, single buffered']
    #allocation3 [shape = 's32[1]{0}', space=sflag, size = 0x4, scoped, tag = 'scoped memory for decoder_forward.1']
    %8 = vsyncpa [#allocation3], 0
    // Predicated region
    $region2: #{decoder_forward.1} parent=1 // pred_check
      _
    $region3: #{decoder_forward.1} parent=1 // pred_check_branch
      %10 = sbr.rel (0) target = $region5
    $region4: #{decoder_forward.1} parent=1 // pred_region
      _
    $region5: #{decoder_forward.1} parent=1 // pred_fallthru
      _
    // Predicated region
    $region6: #{decoder_forward.1} parent=1 // pred_check
      _
    $region7: #{decoder_forward.1} parent=1 // pred_check_branch
      %12 = sbr.rel (0) target = $region9
    $region8: #{decoder_forward.1} parent=1 // pred_region
      _
    $region9: #{decoder_forward.1} parent=1 // pred_fallthru
      _
    // Predicated region
    $region10: #{decoder_forward.1} parent=1 // pred_check
      _
    $region11: #{decoder_forward.1} parent=1 // pred_check_branch
      %14 = sbr.rel (0) target = $region13
    $region12: #{decoder_forward.1} parent=1 // pred_region
      _
    $region13: #{decoder_forward.1} parent=1 // pred_fallthru
      _
    %v15 = vld [vmem:[%s0] sm:$0xff]
    %v16 = vld [vmem:[%s0 + $0x8] sm:$0xff]
    %v17 = vld [vmem:[%s1] sm:$0xff]
    %v18 = vld [vmem:[%s1 + $0x8] sm:$0xff]
    %v19 = vld [vmem:[%s1 + $0x10] sm:$0xff]
    %v20 = vld [vmem:[%s1 + $0x18] sm:$0xff]
    %v21 = vld [vmem:[%s1 + $0x20] sm:$0xff]
    %v22 = vld [vmem:[%s1 + $0x28] sm:$0xff]
    %v23 = vld [vmem:[%s1 + $0x30] sm:$0xff]
    %v24 = vld [vmem:[%s1 + $0x38] sm:$0xff]
    %v25 = vld [vmem:[%s1 + $0x40] sm:$0xff]
    %v26 = vld [vmem:[%s1 + $0x48] sm:$0xff]
    %v27 = vld [vmem:[%s1 + $0x50] sm:$0xff]
    %v28 = vld [vmem:[%s1 + $0x58] sm:$0xff]
    %v29 = vld [vmem:[%s1 + $0x60] sm:$0xff]
    %v30 = vld [vmem:[%s1 + $0x68] sm:$0xff]
    %v31 = vld [vmem:[%s1 + $0x70] sm:$0xff]
    %v32 = vld [vmem:[%s1 + $0x78] sm:$0xff]
    %v33 = vld [vmem:[%s1 + $0x80] sm:$0xff]
    %v34 = vld [vmem:[%s1 + $0x88] sm:$0xff]
    %v35 = vld [vmem:[%s1 + $0x90] sm:$0xff]
    %v36 = vld [vmem:[%s1 + $0x98] sm:$0xff]
    %v37 = vld [vmem:[%s1 + $0xa0] sm:$0xff]
    %v38 = vld [vmem:[%s1 + $0xa8] sm:$0xff]
    %v39 = vld [vmem:[%s1 + $0xb0] sm:$0xff]
    %v40 = vld [vmem:[%s1 + $0xb8] sm:$0xff]
    %v41 = vld [vmem:[%s1 + $0xc0] sm:$0xff]
    %v42 = vld [vmem:[%s1 + $0xc8] sm:$0xff]
    %v43 = vld [vmem:[%s1 + $0xd0] sm:$0xff]
    %v44 = vld [vmem:[%s1 + $0xd8] sm:$0xff]
    %v45 = vld [vmem:[%s1 + $0xe0] sm:$0xff]
    %v46 = vld [vmem:[%s1 + $0xe8] sm:$0xff]
    %v47 = vld [vmem:[%s1 + $0xf0] sm:$0xff]
    %v48 = vld [vmem:[%s1 + $0xf8] sm:$0xff]
    %v49 = vld [vmem:[%s1 + $0x100] sm:$0xff]
    %v50 = vld [vmem:[%s1 + $0x108] sm:$0xff]
    %v51 = vld [vmem:[%s1 + $0x110] sm:$0xff]
    %v52 = vld [vmem:[%s1 + $0x118] sm:$0xff]
    %v53 = vld [vmem:[%s1 + $0x120] sm:$0xff]
    %v54 = vld [vmem:[%s1 + $0x128] sm:$0xff]
    %v55 = vld [vmem:[%s1 + $0x130] sm:$0xff]
    %v56 = vld [vmem:[%s1 + $0x138] sm:$0xff]
    %v57 = vld [vmem:[%s1 + $0x140] sm:$0xff]
    %v58 = vld [vmem:[%s1 + $0x148] sm:$0xff]
    %v59 = vld [vmem:[%s1 + $0x150] sm:$0xff]
    %v60 = vld [vmem:[%s1 + $0x158] sm:$0xff]
    %v61 = vld [vmem:[%s1 + $0x160] sm:$0xff]
    %v62 = vld [vmem:[%s1 + $0x168] sm:$0xff]
    %v63 = vld [vmem:[%s1 + $0x170] sm:$0xff]
    %v64 = vld [vmem:[%s1 + $0x178] sm:$0xff]
    %v65 = vld [vmem:[%s1 + $0x180] sm:$0xff]
    %v66 = vld [vmem:[%s1 + $0x188] sm:$0xff]
    %v67 = vld [vmem:[%s1 + $0x190] sm:$0xff]
    %v68 = vld [vmem:[%s1 + $0x198] sm:$0xff]
    %v69 = vld [vmem:[%s1 + $0x1a0] sm:$0xff]
    %v70 = vld [vmem:[%s1 + $0x1a8] sm:$0xff]
    %v71 = vld [vmem:[%s1 + $0x1b0] sm:$0xff]
    %v72 = vld [vmem:[%s1 + $0x1b8] sm:$0xff]
    %v73 = vld [vmem:[%s1 + $0x1c0] sm:$0xff]
    %v74 = vld [vmem:[%s1 + $0x1c8] sm:$0xff]
    %v75 = vld [vmem:[%s1 + $0x1d0] sm:$0xff]
    %v76 = vld [vmem:[%s1 + $0x1d8] sm:$0xff]
    %v77 = vld [vmem:[%s1 + $0x1e0] sm:$0xff]
    %v78 = vld [vmem:[%s1 + $0x1e8] sm:$0xff]
    %v79 = vld [vmem:[%s1 + $0x1f0] sm:$0xff]
    %v80 = vld [vmem:[%s1 + $0x1f8] sm:$0xff]
    %v81 = vld [vmem:[%s2] sm:$0x3]
    %v83 = vperm.slane %v81, 0
    %v84 = vperm.slane %v81, 1
    %v89 = vunpack.c.l.b16 %v15
    %v90 = vunpack.c.h.b16 %v15
    %v91 = vunpack.c.l.b16 %v16
    %v92 = vunpack.c.h.b16 %v16
    %v93 = vpack.c.b16 %v89, %v89
    %v94 = vpack.c.b16 %v90, %v90
    %v95 = vpack.c.b16 %v91, %v91
    %v96 = vpack.c.b16 %v92, %v92
    %v165 = vunpack.c.l.b16 %v17
    %v166 = vunpack.c.h.b16 %v17
    %v167 = vunpack.c.l.b16 %v18
    %v168 = vunpack.c.h.b16 %v18
    %v169 = vunpack.c.l.b16 %v19
    %v170 = vunpack.c.h.b16 %v19
    %v171 = vunpack.c.l.b16 %v20
    %v172 = vunpack.c.h.b16 %v20
    %v173 = vunpack.c.l.b16 %v21
    %v174 = vunpack.c.h.b16 %v21
    %v175 = vunpack.c.l.b16 %v22
    %v176 = vunpack.c.h.b16 %v22
    %v177 = vunpack.c.l.b16 %v23
    %v178 = vunpack.c.h.b16 %v23
    %v179 = vunpack.c.l.b16 %v24
    %v180 = vunpack.c.h.b16 %v24
    %v181 = vunpack.c.l.b16 %v25
    %v182 = vunpack.c.h.b16 %v25
    %v183 = vunpack.c.l.b16 %v26
    %v184 = vunpack.c.h.b16 %v26
    %v185 = vunpack.c.l.b16 %v27
    %v186 = vunpack.c.h.b16 %v27
    %v187 = vunpack.c.l.b16 %v28
    %v188 = vunpack.c.h.b16 %v28
    %v189 = vunpack.c.l.b16 %v29
    %v190 = vunpack.c.h.b16 %v29
    %v191 = vunpack.c.l.b16 %v30
    %v192 = vunpack.c.h.b16 %v30
    %v193 = vunpack.c.l.b16 %v31
    %v194 = vunpack.c.h.b16 %v31
    %v195 = vunpack.c.l.b16 %v32
    %v196 = vunpack.c.h.b16 %v32
    %v197 = vunpack.c.l.b16 %v33
    %v198 = vunpack.c.h.b16 %v33
    %v199 = vunpack.c.l.b16 %v34
    %v200 = vunpack.c.h.b16 %v34
    %v201 = vunpack.c.l.b16 %v35
    %v202 = vunpack.c.h.b16 %v35
    %v203 = vunpack.c.l.b16 %v36
    %v204 = vunpack.c.h.b16 %v36
    %v205 = vunpack.c.l.b16 %v37
    %v206 = vunpack.c.h.b16 %v37
    %v207 = vunpack.c.l.b16 %v38
    %v208 = vunpack.c.h.b16 %v38
    %v209 = vunpack.c.l.b16 %v39
    %v210 = vunpack.c.h.b16 %v39
    %v211 = vunpack.c.l.b16 %v40
    %v212 = vunpack.c.h.b16 %v40
    %v213 = vunpack.c.l.b16 %v41
    %v214 = vunpack.c.h.b16 %v41
    %v215 = vunpack.c.l.b16 %v42
    %v216 = vunpack.c.h.b16 %v42
    %v217 = vunpack.c.l.b16 %v43
    %v218 = vunpack.c.h.b16 %v43
    %v219 = vunpack.c.l.b16 %v44
    %v220 = vunpack.c.h.b16 %v44
    %v221 = vunpack.c.l.b16 %v45
    %v222 = vunpack.c.h.b16 %v45
    %v223 = vunpack.c.l.b16 %v46
    %v224 = vunpack.c.h.b16 %v46
    %v225 = vunpack.c.l.b16 %v47
    %v226 = vunpack.c.h.b16 %v47
    %v227 = vunpack.c.l.b16 %v48
    %v228 = vunpack.c.h.b16 %v48
    %v229 = vunpack.c.l.b16 %v49
    %v230 = vunpack.c.h.b16 %v49
    %v231 = vunpack.c.l.b16 %v50
    %v232 = vunpack.c.h.b16 %v50
    %v233 = vunpack.c.l.b16 %v51
    %v234 = vunpack.c.h.b16 %v51
    %v235 = vunpack.c.l.b16 %v52
    %v236 = vunpack.c.h.b16 %v52
    %v237 = vunpack.c.l.b16 %v53
    %v238 = vunpack.c.h.b16 %v53
    %v239 = vunpack.c.l.b16 %v54
    %v240 = vunpack.c.h.b16 %v54
    %v241 = vunpack.c.l.b16 %v55
    %v242 = vunpack.c.h.b16 %v55
    %v243 = vunpack.c.l.b16 %v56
    %v244 = vunpack.c.h.b16 %v56
    %v245 = vunpack.c.l.b16 %v57
    %v246 = vunpack.c.h.b16 %v57
    %v247 = vunpack.c.l.b16 %v58
    %v248 = vunpack.c.h.b16 %v58
    %v249 = vunpack.c.l.b16 %v59
    %v250 = vunpack.c.h.b16 %v59
    %v251 = vunpack.c.l.b16 %v60
    %v252 = vunpack.c.h.b16 %v60
    %v253 = vunpack.c.l.b16 %v61
    %v254 = vunpack.c.h.b16 %v61
    %v255 = vunpack.c.l.b16 %v62
    %v256 = vunpack.c.h.b16 %v62
    %v257 = vunpack.c.l.b16 %v63
    %v258 = vunpack.c.h.b16 %v63
    %v259 = vunpack.c.l.b16 %v64
    %v260 = vunpack.c.h.b16 %v64
    %v261 = vunpack.c.l.b16 %v65
    %v262 = vunpack.c.h.b16 %v65
    %v263 = vunpack.c.l.b16 %v66
    %v264 = vunpack.c.h.b16 %v66
    %v265 = vunpack.c.l.b16 %v67
    %v266 = vunpack.c.h.b16 %v67
    %v267 = vunpack.c.l.b16 %v68
    %v268 = vunpack.c.h.b16 %v68
    %v269 = vunpack.c.l.b16 %v69
    %v270 = vunpack.c.h.b16 %v69
    %v271 = vunpack.c.l.b16 %v70
    %v272 = vunpack.c.h.b16 %v70
    %v273 = vunpack.c.l.b16 %v71
    %v274 = vunpack.c.h.b16 %v71
    %v275 = vunpack.c.l.b16 %v72
    %v276 = vunpack.c.h.b16 %v72
    %v277 = vunpack.c.l.b16 %v73
    %v278 = vunpack.c.h.b16 %v73
    %v279 = vunpack.c.l.b16 %v74
    %v280 = vunpack.c.h.b16 %v74
    %v281 = vunpack.c.l.b16 %v75
    %v282 = vunpack.c.h.b16 %v75
    %v283 = vunpack.c.l.b16 %v76
    %v284 = vunpack.c.h.b16 %v76
    %v285 = vunpack.c.l.b16 %v77
    %v286 = vunpack.c.h.b16 %v77
    %v287 = vunpack.c.l.b16 %v78
    %v288 = vunpack.c.h.b16 %v78
    %v289 = vunpack.c.l.b16 %v79
    %v290 = vunpack.c.h.b16 %v79
    %v291 = vunpack.c.l.b16 %v80
    %v292 = vunpack.c.h.b16 %v80
    %v293 = vpack.c.b16 %v167, %v165
    %v294 = vpack.c.b16 %v168, %v166
    %v295 = vpack.c.b16 %v171, %v169
    %v296 = vpack.c.b16 %v172, %v170
    %v297 = vpack.c.b16 %v175, %v173
    %v298 = vpack.c.b16 %v176, %v174
    %v299 = vpack.c.b16 %v179, %v177
    %v300 = vpack.c.b16 %v180, %v178
    %v301 = vpack.c.b16 %v183, %v181
    %v302 = vpack.c.b16 %v184, %v182
    %v303 = vpack.c.b16 %v187, %v185
    %v304 = vpack.c.b16 %v188, %v186
    %v305 = vpack.c.b16 %v191, %v189
    %v306 = vpack.c.b16 %v192, %v190
    %v307 = vpack.c.b16 %v195, %v193
    %v308 = vpack.c.b16 %v196, %v194
    %v309 = vpack.c.b16 %v199, %v197
    %v310 = vpack.c.b16 %v200, %v198
    %v311 = vpack.c.b16 %v203, %v201
    %v312 = vpack.c.b16 %v204, %v202
    %v313 = vpack.c.b16 %v207, %v205
    %v314 = vpack.c.b16 %v208, %v206
    %v315 = vpack.c.b16 %v211, %v209
    %v316 = vpack.c.b16 %v212, %v210
    %v317 = vpack.c.b16 %v215, %v213
    %v318 = vpack.c.b16 %v216, %v214
    %v319 = vpack.c.b16 %v219, %v217
    %v320 = vpack.c.b16 %v220, %v218
    %v321 = vpack.c.b16 %v223, %v221
    %v322 = vpack.c.b16 %v224, %v222
    %v323 = vpack.c.b16 %v227, %v225
    %v324 = vpack.c.b16 %v228, %v226
    %v325 = vpack.c.b16 %v231, %v229
    %v326 = vpack.c.b16 %v232, %v230
    %v327 = vpack.c.b16 %v235, %v233
    %v328 = vpack.c.b16 %v236, %v234
    %v329 = vpack.c.b16 %v239, %v237
    %v330 = vpack.c.b16 %v240, %v238
    %v331 = vpack.c.b16 %v243, %v241
    %v332 = vpack.c.b16 %v244, %v242
    %v333 = vpack.c.b16 %v247, %v245
    %v334 = vpack.c.b16 %v248, %v246
    %v335 = vpack.c.b16 %v251, %v249
    %v336 = vpack.c.b16 %v252, %v250
    %v337 = vpack.c.b16 %v255, %v253
    %v338 = vpack.c.b16 %v256, %v254
    %v339 = vpack.c.b16 %v259, %v257
    %v340 = vpack.c.b16 %v260, %v258
    %v341 = vpack.c.b16 %v263, %v261
    %v342 = vpack.c.b16 %v264, %v262
    %v343 = vpack.c.b16 %v267, %v265
    %v344 = vpack.c.b16 %v268, %v266
    %v345 = vpack.c.b16 %v271, %v269
    %v346 = vpack.c.b16 %v272, %v270
    %v347 = vpack.c.b16 %v275, %v273
    %v348 = vpack.c.b16 %v276, %v274
    %v349 = vpack.c.b16 %v279, %v277
    %v350 = vpack.c.b16 %v280, %v278
    %v351 = vpack.c.b16 %v283, %v281
    %v352 = vpack.c.b16 %v284, %v282
    %v353 = vpack.c.b16 %v287, %v285
    %v354 = vpack.c.b16 %v288, %v286
    %v355 = vpack.c.b16 %v291, %v289
    %v356 = vpack.c.b16 %v292, %v290
    %421 = vmatpush.bf16.msra.mxu0 %v307
    %422 = vmatpush.bf16.msra.mxu0 %v305
    %423 = vmatpush.bf16.msra.mxu0 %v303
    %424 = vmatpush.bf16.msra.mxu0 %v301
    %425 = vmatpush.bf16.msra.mxu0 %v299
    %426 = vmatpush.bf16.msra.mxu0 %v297
    %427 = vmatpush.bf16.msra.mxu0 %v295
    %428 = vmatpush.bf16.msra.mxu0 %v293
    %429 = vmatmul.bf16.gmra.mxu0 %v93
    %v430 = vpop.f32.mrf.mxu0
    %v431 = vadd.f32 %v83, %v430
    %v432 = vpop.f32.mrf.mxu0
    %433 = vdwg.mxu0
    %434 = vmatpush.bf16.msra.mxu0 %v323
    %435 = vmatpush.bf16.msra.mxu0 %v321
    %436 = vmatpush.bf16.msra.mxu0 %v319
    %437 = vmatpush.bf16.msra.mxu0 %v317
    %438 = vmatpush.bf16.msra.mxu0 %v315
    %439 = vmatpush.bf16.msra.mxu0 %v313
    %440 = vmatpush.bf16.msra.mxu0 %v311
    %441 = vmatpush.bf16.msra.mxu0 %v309
    %442 = vmatmul.bf16.gmra.mxu0 %v94
    %v443 = vpop.f32.mrf.mxu0
    %v444 = vadd.f32 %v431, %v443
    %v445 = vpop.f32.mrf.mxu0
    %446 = vdwg.mxu0
    %447 = vmatpush.bf16.msra.mxu0 %v339
    %448 = vmatpush.bf16.msra.mxu0 %v337
    %449 = vmatpush.bf16.msra.mxu0 %v335
    %450 = vmatpush.bf16.msra.mxu0 %v333
    %451 = vmatpush.bf16.msra.mxu0 %v331
    %452 = vmatpush.bf16.msra.mxu0 %v329
    %453 = vmatpush.bf16.msra.mxu0 %v327
    %454 = vmatpush.bf16.msra.mxu0 %v325
    %455 = vmatmul.bf16.gmra.mxu0 %v95
    %v456 = vpop.f32.mrf.mxu0
    %v457 = vadd.f32 %v444, %v456
    %v458 = vpop.f32.mrf.mxu0
    %459 = vdwg.mxu0
    %460 = vmatpush.bf16.msra.mxu0 %v355
    %461 = vmatpush.bf16.msra.mxu0 %v353
    %462 = vmatpush.bf16.msra.mxu0 %v351
    %463 = vmatpush.bf16.msra.mxu0 %v349
    %464 = vmatpush.bf16.msra.mxu0 %v347
    %465 = vmatpush.bf16.msra.mxu0 %v345
    %466 = vmatpush.bf16.msra.mxu0 %v343
    %467 = vmatpush.bf16.msra.mxu0 %v341
    %468 = vmatmul.bf16.gmra.mxu0 %v96
    %v469 = vpop.f32.mrf.mxu0
    %v470 = vadd.f32 %v457, %v469
    %v471 = vpop.f32.mrf.mxu0
    %472 = vdwg.mxu0
    %473 = vmatpush.bf16.msra.mxu0 %v308
    %474 = vmatpush.bf16.msra.mxu0 %v306
    %475 = vmatpush.bf16.msra.mxu0 %v304
    %476 = vmatpush.bf16.msra.mxu0 %v302
    %477 = vmatpush.bf16.msra.mxu0 %v300
    %478 = vmatpush.bf16.msra.mxu0 %v298
    %479 = vmatpush.bf16.msra.mxu0 %v296
    %480 = vmatpush.bf16.msra.mxu0 %v294
    %481 = vmatmul.bf16.gmra.mxu0 %v93
    %v482 = vpop.f32.mrf.mxu0
    %v483 = vadd.f32 %v84, %v482
    %v484 = vpop.f32.mrf.mxu0
    %485 = vdwg.mxu0
    %486 = vmatpush.bf16.msra.mxu0 %v324
    %487 = vmatpush.bf16.msra.mxu0 %v322
    %488 = vmatpush.bf16.msra.mxu0 %v320
    %489 = vmatpush.bf16.msra.mxu0 %v318
    %490 = vmatpush.bf16.msra.mxu0 %v316
    %491 = vmatpush.bf16.msra.mxu0 %v314
    %492 = vmatpush.bf16.msra.mxu0 %v312
    %493 = vmatpush.bf16.msra.mxu0 %v310
    %494 = vmatmul.bf16.gmra.mxu0 %v94
    %v495 = vpop.f32.mrf.mxu0
    %v496 = vadd.f32 %v483, %v495
    %v497 = vpop.f32.mrf.mxu0
    %498 = vdwg.mxu0
    %499 = vmatpush.bf16.msra.mxu0 %v340
    %500 = vmatpush.bf16.msra.mxu0 %v338
    %501 = vmatpush.bf16.msra.mxu0 %v336
    %502 = vmatpush.bf16.msra.mxu0 %v334
    %503 = vmatpush.bf16.msra.mxu0 %v332
    %504 = vmatpush.bf16.msra.mxu0 %v330
    %505 = vmatpush.bf16.msra.mxu0 %v328
    %506 = vmatpush.bf16.msra.mxu0 %v326
    %507 = vmatmul.bf16.gmra.mxu0 %v95
    %v508 = vpop.f32.mrf.mxu0
    %v509 = vadd.f32 %v496, %v508
    %v510 = vpop.f32.mrf.mxu0
    %511 = vdwg.mxu0
    %512 = vmatpush.bf16.msra.mxu0 %v356
    %513 = vmatpush.bf16.msra.mxu0 %v354
    %514 = vmatpush.bf16.msra.mxu0 %v352
    %515 = vmatpush.bf16.msra.mxu0 %v350
    %516 = vmatpush.bf16.msra.mxu0 %v348
    %517 = vmatpush.bf16.msra.mxu0 %v346
    %518 = vmatpush.bf16.msra.mxu0 %v344
    %519 = vmatpush.bf16.msra.mxu0 %v342
    %520 = vmatmul.bf16.gmra.mxu0 %v96
    %v521 = vpop.f32.mrf.mxu0
    %v522 = vadd.f32 %v509, %v521
    %v523 = vpop.f32.mrf.mxu0
    %524 = vdwg.mxu0
    %v525 = vxor.u32 %v470, 2147483648
    %v526 = vxor.u32 %v522, 2147483648
    %v527 = vmul.f32 %v525, 1.442695
    %v528 = vpow.pop %v527
    %v529 = vmul.f32 %v526, 1.442695
    %v530 = vpow.pop %v529
    %v531 = vadd.f32 %v528, 1.0
    %v532 = vadd.f32 %v530, 1.0
    %v533 = vrcp.pop %v531
    %v534 = vmul.f32 %v531, %v533
    %v535 = vsub.f32 1.0, %v534
    %v536 = vmul.f32 %v533, %v535
    %v537 = vadd.f32 %v533, %v536
    %vm538 = vweird.f32 %v531
    %vm539 = vweird.f32 %v533
    %vm540 = vmor %vm538, %vm539
    %v541 = vsel %vm540, %v533, %v537
    %v542 = vand.u32 2147483647, %v531
    %vm543 = vcmp.eq.f32.partialorder %v542, 8.507059e+37
    %v544 = vand.u32 %v531, 2147483648
    %v545 = vor.u32 1.1754944e-38, %v544
    %v546 = vsel %vm543, %v545, %v541
    %v547 = vmul.f32 1.0, %v546
    %v548 = vrcp.pop %v532
    %v549 = vmul.f32 %v532, %v548
    %v550 = vsub.f32 1.0, %v549
    %v551 = vmul.f32 %v548, %v550
    %v552 = vadd.f32 %v548, %v551
    %vm553 = vweird.f32 %v532
    %vm554 = vweird.f32 %v548
    %vm555 = vmor %vm553, %vm554
    %v556 = vsel %vm555, %v548, %v552
    %v557 = vand.u32 2147483647, %v532
    %vm558 = vcmp.eq.f32.partialorder %v557, 8.507059e+37
    %v559 = vand.u32 %v532, 2147483648
    %v560 = vor.u32 1.1754944e-38, %v559
    %v561 = vsel %vm558, %v560, %v556
    %v562 = vmul.f32 1.0, %v561
    %563 = vst [vmem:[#allocation2] sm:$0xff] %v547
    %564 = vst [vmem:[#allocation2 + $0x8] sm:$0xff] %v562
    // Predicated region
    $region14: #{decoder_forward.1} parent=1 // pred_check
      _
    $region15: #{decoder_forward.1} parent=1 // pred_check_branch
      %566 = sbr.rel (0) target = $region17
    $region16: #{decoder_forward.1} parent=1 // pred_region
      %568 = vsyncadd [#allocation3], 0
      %s570 = sshll.u32 [#allocation2], 4
      %s571 = int_to_ptr.vmem [resolvable:$true] %s570
      %s572 = sshll.u32 %s3, 4
      %s573 = int_to_ptr.hbm [resolvable:$true] %s572
      %575 = dma.vmem_to_hbm [thread:$0]  %s571, 256, %s573, [#allocation3]
    $region17: #{decoder_forward.1} parent=1 // pred_fallthru
      _
    // Predicated region
    $region18: #{decoder_forward.1} parent=1 // pred_check
      _
    $region19: #{decoder_forward.1} parent=1 // pred_check_branch
      %577 = sbr.rel (0) target = $region21
    $region20: #{decoder_forward.1} parent=1 // pred_region
      %579 = dma.done [#allocation3], 256
    $region21: #{decoder_forward.1} parent=1 // pred_fallthru
      _
    %580 = vsyncpa [#allocation3], 1

</llo_original>
